<compile_context>
chip_gen: v7x
topology: tpu7x:2x2x1
jax: 0.10.0
libtpu: 0.0.40
codegen_flags: <defaults>
</compile_context>

<pallas_src>
import functools

import jax
import jax.numpy as jnp
from jax.experimental import pallas as pl
from jax.experimental.pallas import tpu as pltpu


_DEFAULT_TILE_BYTES = 4 << 20  # ~4 MiB per tile; double-buffered in+out = 16 MiB


def _trilinear_kernel_body(x_ref, o_ref, *, num_channels: int):
    """Elementwise trilinear voting on one (block_rows, cols) tile."""
    c = float(num_channels - 1)               # Python float -> folded constant
    ts = x_ref[...].astype(jnp.float32)       # compute in f32 even for bf16 in
    a = jnp.abs(ts) * c
    # where() (not max) so NaN inputs produce 0, matching PyTorch's masked writes.
    val = jnp.where(a < 1.0, 1.0 - a, 0.0)
    o_ref[...] = val.astype(o_ref.dtype)


def _sublane_multiple(dtype) -> int:
    """Minimum second-to-last tile dim per dtype packing (f32:8, bf16:16, i8:32)."""
    itemsize = jnp.dtype(dtype).itemsize
    return {4: 8, 2: 16, 1: 32}.get(itemsize, 8)


def _pick_cols(n: int):
    """Largest lane-dense column count that divides n (no pad needed), or None."""
    for c in (4096, 2048, 1024, 512, 256, 128):
        if n % c == 0:
            return c
    return None


def _pick_block_rows(rows: int, cols: int, dtype, target_tile_bytes: int) -> int:
    sub = _sublane_multiple(dtype)
    itemsize = jnp.dtype(dtype).itemsize
    br = max(sub, (target_tile_bytes // (cols * itemsize)) // sub * sub)
    if br >= rows:
        if rows >= 2 * sub:
            # Whole input fits one target tile: split into >=2 blocks so both
            # v7x TensorCores get work (harmless ~0.35us extra step elsewhere).
            br = pl.cdiv(pl.cdiv(rows, 2), sub) * sub
        else:
            # Tiny input: full-extent row block (exempt from the 8-row rule).
            br = rows
    return br


def value_layer_forward(x: jax.Array, num_channels: int = 32,
                        target_tile_bytes: int = _DEFAULT_TILE_BYTES) -> jax.Array:
    """Pallas implementation of ValueLayer.forward (== trilinear_kernel)."""
    assert num_channels >= 2, "num_channels=1 divides by zero in the original module"

    orig_shape = x.shape
    n = x.size
    if n == 0:
        return x

    cols = _pick_cols(n)
    if cols is not None:
        # Fast path: free contiguous reshape, no pad, no crop, no extra HBM pass.
        slab = x.reshape(n // cols, cols)
        crop = None
    else:
        # Fallback: pad a single partial row (< 2048 elements), crop afterwards.
        # TODO(synk): could use allow_input_fusion to fuse the pad into the
        # kernel's input pipeline and drop one HBM pass on odd-sized inputs.
        cols = 2048
        rows = pl.cdiv(n, cols)
        flat = jnp.pad(x.reshape(-1), (0, rows * cols - n))
        slab = flat.reshape(rows, cols)
        crop = n

    rows = slab.shape[0]
    br = _pick_block_rows(rows, cols, x.dtype, target_tile_bytes)

    spec = pl.BlockSpec((br, cols), lambda i: (i, 0))
    kernel = functools.partial(_trilinear_kernel_body, num_channels=num_channels)

    out_slab = pl.pallas_call(
        kernel,
        out_shape=jax.ShapeDtypeStruct(slab.shape, x.dtype),
        grid=(pl.cdiv(rows, br),),          # ragged final block handled by Pallas
        in_specs=[spec],
        out_specs=spec,
        compiler_params=pltpu.CompilerParams(
            dimension_semantics=("parallel",),
            vmem_limit_bytes=32 << 20,      # headroom for 16 MiB of buffers on v5e
        ),
    )(slab)

    if crop is None:
        return out_slab.reshape(orig_shape)
    return out_slab.reshape(-1)[:crop].reshape(orig_shape)


def value_layer_forward_ref(x: jax.Array, num_channels: int = 32) -> jax.Array:
    """Pure-JAX reference mirroring the PyTorch masked assignments exactly."""
    ts = x.astype(jnp.float32)
    c = float(num_channels - 1)
    gt = jnp.zeros_like(ts)
    gt = jnp.where(ts >= 0.0, 1.0 - c * ts, gt)
    gt = jnp.where(ts < 0.0, c * ts + 1.0, gt)
    gt = jnp.where(ts < -1.0 / c, 0.0, gt)
    gt = jnp.where(ts >= 1.0 / c, 0.0, gt)
    return gt.astype(x.dtype)


# NOTE: the module's __init__ also builds an MLP (nn.Linear stack defined by
# mlp_layers), but forward() never reaches it (early return), so no MLP
# parameters are needed for an exact forward-pass reproduction.
# TODO(synk): if the dead-code MLP path is ever re-enabled, add a second
# Pallas kernel for the tiny per-element MLP (1 -> ... -> 1) with ReLU.


if __name__ == "__main__":
    key = jax.random.PRNGKey(0)
    num_channels = 32
    k1, k2, k3 = jax.random.split(key, 3)

    # Case 1: "nice" shape -> no-pad fast path (n divisible by 2048).
    x1 = jax.random.uniform(k1, (8, 256), jnp.float32, minval=-1.0, maxval=1.0)
    out1 = jax.block_until_ready(value_layer_forward(x1, num_channels))
    assert out1.shape == x1.shape and out1.dtype == x1.dtype
    assert jnp.allclose(out1, value_layer_forward_ref(x1, num_channels),
                        atol=1e-6, rtol=1e-6)

    # Case 2: odd size -> single-partial-row pad/crop fallback path.
    x2 = jax.random.uniform(k2, (5, 77), jnp.float32, minval=-1.0, maxval=1.0)
    out2 = jax.block_until_ready(value_layer_forward(x2, num_channels))
    assert out2.shape == x2.shape
    assert jnp.allclose(out2, value_layer_forward_ref(x2, num_channels),
                        atol=1e-6, rtol=1e-6)

    # Case 3: multi-step ragged row grid (small tile target forces >1 block).
    x3 = jax.random.uniform(k3, (20, 2048), jnp.float32, minval=-1.0, maxval=1.0)
    out3 = jax.block_until_ready(
        value_layer_forward(x3, num_channels, target_tile_bytes=64 << 10))
    assert out3.shape == x3.shape
    assert jnp.allclose(out3, value_layer_forward_ref(x3, num_channels),
                        atol=1e-6, rtol=1e-6)

    print("KERNEL_OK")
</pallas_src>

<mosaic_0001>
module attributes {stable_mosaic.version = 11 : i64} {
  func.func @_trilinear_kernel_body(%arg0: i32, %arg1: memref<1x2048xf32, #tpu.memory_space<vmem>>, %arg2: memref<1x2048xf32, #tpu.memory_space<vmem>>) attributes {dimension_semantics = [#tpu.dimension_semantics<parallel>], iteration_bounds = array<i64: 1>, scalar_prefetch = 0 : i64, scratch_operands = 0 : i64, tpu.core_type = #tpu.core_type<tc>, window_params = [{transform_indices = @transform_0, window_bounds = array<i64: 1, 2048>}, {transform_indices = @transform_1, window_bounds = array<i64: 1, 2048>}]} {
    %c0 = arith.constant 0 : index
    %c0_0 = arith.constant 0 : index
    %0 = vector.load %arg1[%c0, %c0_0] : memref<1x2048xf32, #tpu.memory_space<vmem>>, vector<1x2048xf32>
    %1 = math.absf %0 : vector<1x2048xf32>
    %cst = arith.constant 3.100000e+01 : f32
    %2 = vector.broadcast %cst : f32 to vector<1x2048xf32>
    %3 = arith.mulf %1, %2 : vector<1x2048xf32>
    %cst_1 = arith.constant 1.000000e+00 : f32
    %4 = vector.broadcast %cst_1 : f32 to vector<1x2048xf32>
    %5 = arith.cmpf olt, %3, %4 : vector<1x2048xf32>
    %cst_2 = arith.constant 1.000000e+00 : f32
    %6 = vector.broadcast %cst_2 : f32 to vector<1x2048xf32>
    %7 = arith.subf %6, %3 : vector<1x2048xf32>
    %cst_3 = arith.constant 0.000000e+00 : f32
    %8 = vector.broadcast %cst_3 : f32 to vector<1x2048xf32>
    %9 = arith.select %5, %7, %8 : vector<1x2048xi1>, vector<1x2048xf32>
    %c0_4 = arith.constant 0 : index
    %c0_5 = arith.constant 0 : index
    %10 = vector.load %arg2[%c0_4, %c0_5] : memref<1x2048xf32, #tpu.memory_space<vmem>>, vector<1x2048xf32>
    tpu.vector_store %arg2[%c0_4, %c0_5], %9 {strides = array<i32>} : memref<1x2048xf32, #tpu.memory_space<vmem>>, vector<1x2048xf32>,
    return
  }
  func.func @transform_0(%arg0: i32) -> (i32, i32) {
    %c0_i32 = arith.constant 0 : i32
    %c0_i32_0 = arith.constant 0 : i32
    return %arg0, %c0_i32 : i32, i32
  }
  func.func @transform_1(%arg0: i32) -> (i32, i32) {
    %c0_i32 = arith.constant 0 : i32
    %c0_i32_0 = arith.constant 0 : i32
    return %arg0, %c0_i32 : i32, i32
  }
}

</mosaic_0001>

<llo_original>
// kernel: tpu_custom_call.1
$region0: #{tpu_custom_call.1}
  #allocation0 [shape = 'u32[]', space=smem, size = 0x4, offset = 0x4, fixed_abs, tag = 'smem constant byte address 0x4 - core index']
  #allocation1 [shape = 'u32[144,128]{1,0:T(1,128)}', space=vmem, size = 0x12000, scoped, tag = 'internal scratch']
  %s0 = inlined_call_operand.hbm [shape: f32[1,2048], index: 0, kind: input, shape index: {}]
  %s1 = inlined_call_operand.hbm [shape: f32[1,2048], index: 1, kind: output, shape index: {}]
  %s2 = sld [smem:[#allocation0]]
  $region18: #{tpu_custom_call.1} parent=0
    _
  %s4 = ssub.s32 1, %s2
  %s5 = scalar_select 0, %s4, %s2
  $region1: #{tpu_custom_call.1} parent=0
    #allocation2 [shape = 'u8[8192]{0}', space=vmem, size = 0x2000, scoped, tag = 'input window, operand 0, single buffered']
    #allocation3 [shape = 's32[1]{0}', space=sflag, size = 0x4, scoped, tag = 'scoped memory for tpu_custom_call.1']
    #allocation4 [shape = 's32[1]{0}', space=sflag, size = 0x4, scoped, tag = 'scoped memory for tpu_custom_call.1']
    #allocation5 [shape = 'u8[8192]{0}', space=vmem, size = 0x2000, scoped, tag = 'output window, operand 0, single buffered']
    %6 = vsyncpa [#allocation3], 0
    %7 = vsyncpa [#allocation4], 0
    // Predicated region
    $region2: #{tpu_custom_call.1} parent=1 // pred_check
      _
    $region3: #{tpu_custom_call.1} parent=1 // pred_check_branch
      %9 = sbr.rel (0) target = $region5
    $region4: #{tpu_custom_call.1} parent=1 // pred_region
      %s11 = ssub.s32 256, 256
      %12 = vsyncadd [#allocation3], %s11
      %s14 = sshll.u32 [#allocation2], 4
      %s15 = int_to_ptr.vmem [resolvable:$true] %s14
      %17 = dma.hbm_to_vmem [thread:$0]  %s0, 256, %s15, [#allocation3]
    $region5: #{tpu_custom_call.1} parent=1 // pred_fallthru
      _
    // Predicated region
    $region6: #{tpu_custom_call.1} parent=1 // pred_check
      _
    $region7: #{tpu_custom_call.1} parent=1 // pred_check_branch
      %19 = sbr.rel (0) target = $region9
    $region8: #{tpu_custom_call.1} parent=1 // pred_region
      %20 = dma.done [#allocation3], 256
    $region9: #{tpu_custom_call.1} parent=1 // pred_fallthru
      _
    %v21 = vld [vmem:[#allocation2] sm:$0xff]
    %v22 = vld [vmem:[#allocation2 + $0x8] sm:$0xff]
    %v23 = vand.u32 2147483647, %v21
    %v24 = vand.u32 2147483647, %v22
    %v25 = vmul.f32 %v23, 31.0
    %v26 = vmul.f32 %v24, 31.0
    %vm27 = vcmp.lt.f32.partialorder %v25, 1.0
    %vm28 = vcmp.lt.f32.partialorder %v26, 1.0
    %v29 = vsub.f32 1.0, %v25
    %v30 = vsub.f32 1.0, %v26
    %v31 = vsel %vm27, %v29, 0.0
    %v32 = vsel %vm28, %v30, 0.0
    %33 = vst [vmem:[#allocation5] sm:$0xff] %v31
    %34 = vst [vmem:[#allocation5 + $0x8] sm:$0xff] %v32
    // Predicated region
    $region10: #{tpu_custom_call.1} parent=1 // pred_check
      _
    $region11: #{tpu_custom_call.1} parent=1 // pred_check_branch
      %36 = sbr.rel (0) target = $region13
    $region12: #{tpu_custom_call.1} parent=1 // pred_region
      %s38 = ssub.s32 256, 256
      %39 = vsyncadd [#allocation4], %s38
      %s41 = sshll.u32 [#allocation5], 4
      %s42 = int_to_ptr.vmem [resolvable:$true] %s41
      %44 = dma.vmem_to_hbm [thread:$0]  %s42, 256, %s1, [#allocation4]
    $region13: #{tpu_custom_call.1} parent=1 // pred_fallthru
      _
    // Predicated region
    $region14: #{tpu_custom_call.1} parent=1 // pred_check
      _
    $region15: #{tpu_custom_call.1} parent=1 // pred_check_branch
      %46 = sbr.rel (0) target = $region17
    $region16: #{tpu_custom_call.1} parent=1 // pred_region
      %47 = dma.done [#allocation4], 256
    $region17: #{tpu_custom_call.1} parent=1 // pred_fallthru
      _
    %48 = vsyncpa [#allocation3], 1
    %49 = vsyncpa [#allocation4], 1

</llo_original>
